<compile_context>
chip_gen: v7x
topology: tpu7x:2x2x1
jax: 0.10.0
libtpu: 0.0.40
codegen_flags: <defaults>
</compile_context>

<pallas_src>
import functools

import jax
import jax.numpy as jnp
from jax.experimental import pallas as pl
from jax.experimental.pallas import tpu as pltpu

P = 128  # padded feature width of the packed parameter slabs (>= max layer dim)


def _round_up(n, m):
    return ((n + m - 1) // m) * m


def qnet_kernel(x_ref, w_ref, b_ref, o_ref, *, state_size, action_size):
    # x_ref: (TM, S) bf16   w_ref: (3, P, P) bf16 (VMEM-resident across steps)
    # b_ref: (3, P)  f32    o_ref: (TM, A) f32
    b = b_ref[...]                                   # (3, P) f32

    # fc1 + relu: bf16 MXU operands, f32 accumulation, f32 epilogue.
    w0 = w_ref[0]                                    # (P, P) bf16
    h = jnp.dot(x_ref[...], w0[:state_size, :],      # (TM, S) @ (S, P)
                preferred_element_type=jnp.float32)
    h = jnp.maximum(h + b[0:1, :], 0.0)              # padded cols stay exactly 0

    # fc2 + relu (padded rows/cols of the slab are zero, so padding is inert).
    h = jnp.dot(h.astype(jnp.bfloat16), w_ref[1],
                preferred_element_type=jnp.float32)
    h = jnp.maximum(h + b[1:2, :], 0.0)

    # fc3 (no activation); store only the real action_size lanes.
    h = jnp.dot(h.astype(jnp.bfloat16), w_ref[2],
                preferred_element_type=jnp.float32)
    h = h + b[2:3, :]
    o_ref[...] = h[:, :action_size].astype(o_ref.dtype)


def pack_params(params):
    """Pack (w1,b1,w2,b2,w3,b3) into one bf16 weight slab + one f32 bias slab."""
    w1, b1, w2, b2, w3, b3 = (params[k] for k in ("w1", "b1", "w2", "b2", "w3", "b3"))
    S, F1 = w1.shape
    F2 = w2.shape[1]
    A = w3.shape[1]
    assert max(S, F1, F2, A) <= P, "layer widths must fit in the padded slab"

    w_slab = jnp.zeros((3, P, P), jnp.bfloat16)
    w_slab = w_slab.at[0, :S, :F1].set(w1.astype(jnp.bfloat16))
    w_slab = w_slab.at[1, :F1, :F2].set(w2.astype(jnp.bfloat16))
    w_slab = w_slab.at[2, :F2, :A].set(w3.astype(jnp.bfloat16))

    b_slab = jnp.zeros((3, P), jnp.float32)
    b_slab = b_slab.at[0, :F1].set(b1.reshape(-1))
    b_slab = b_slab.at[1, :F2].set(b2.reshape(-1))
    b_slab = b_slab.at[2, :A].set(b3.reshape(-1))
    return w_slab, b_slab, (S, F1, F2, A)


def qnetwork_forward(x, w_slab, b_slab, dims, tm=128):
    """x: [B, state_size] f32. Returns [B, action_size] f32.

    tm ~ 128 works for act(); raise to 256-512 for big replay batches.
    """
    S, F1, F2, A = dims
    B = x.shape[0]
    TM = min(tm, _round_up(B, 8))
    Bp = _round_up(B, TM)

    xb = x.astype(jnp.bfloat16)
    if Bp != B:
        xb = jnp.pad(xb, ((0, Bp - B), (0, 0)))

    grid = (Bp // TM,)
    flops = 2 * B * (S * F1 + F1 * F2 + F2 * A)
    bytes_accessed = (Bp * S * 2            # x (bf16)
                      + w_slab.size * 2     # weight slab (bf16)
                      + b_slab.size * 4     # bias slab (f32)
                      + Bp * A * 4)         # output (f32)

    out = pl.pallas_call(
        functools.partial(qnet_kernel, state_size=S, action_size=A),
        out_shape=jax.ShapeDtypeStruct((Bp, A), jnp.float32),
        grid_spec=pltpu.PrefetchScalarGridSpec(
            num_scalar_prefetch=0,
            grid=grid,
            in_specs=[
                pl.BlockSpec((TM, S), lambda i: (i, 0)),       # stream x rows
                pl.BlockSpec((3, P, P), lambda i: (0, 0, 0)),  # weights: resident
                pl.BlockSpec((3, P), lambda i: (0, 0)),        # biases:  resident
            ],
            out_specs=pl.BlockSpec((TM, A), lambda i: (i, 0)),
        ),
        compiler_params=pltpu.CompilerParams(
            dimension_semantics=("parallel",)),                # v7x: split rows on 2 TCs
        cost_estimate=pl.CostEstimate(
            flops=flops, transcendentals=0, bytes_accessed=bytes_accessed),
    )(xb, w_slab, b_slab)

    return out[:B] if Bp != B else out


def init_params(key, state_size, action_size, fc1_units=50, fc2_units=30):
    """Mirror the PyTorch module: weights ~ Normal(0, 0.1); biases keep the
    nn.Linear default U(-1/sqrt(fan_in), +1/sqrt(fan_in))."""
    ks = jax.random.split(key, 6)

    def linear(kw, kb, fan_in, fan_out):
        w = 0.1 * jax.random.normal(kw, (fan_in, fan_out), dtype=jnp.float32)
        bound = 1.0 / jnp.sqrt(jnp.float32(fan_in))
        b = jax.random.uniform(kb, (1, fan_out), dtype=jnp.float32,
                               minval=-bound, maxval=bound)
        return w, b

    w1, b1 = linear(ks[0], ks[1], state_size, fc1_units)
    w2, b2 = linear(ks[2], ks[3], fc1_units, fc2_units)
    w3, b3 = linear(ks[4], ks[5], fc2_units, action_size)
    return {"w1": w1, "b1": b1, "w2": w2, "b2": b2, "w3": w3, "b3": b3}


if __name__ == "__main__":
    key = jax.random.PRNGKey(0)
    k_x, k_p = jax.random.split(key)

    # Replay-batch sized input: fills >=128 MXU rows and exercises the grid.
    batch, state_size, action_size = 256, 16, 4
    x = jax.random.normal(k_x, (batch, state_size), dtype=jnp.float32)
    params = init_params(k_p, state_size, action_size, fc1_units=50, fc2_units=30)
    w_slab, b_slab, dims = pack_params(params)

    fwd = jax.jit(functools.partial(qnetwork_forward, dims=dims, tm=128))
    out = jax.block_until_ready(fwd(x, w_slab, b_slab))

    # Reference 1: same bf16-operand / f32-accumulate math in plain JAX.
    w1b = params["w1"].astype(jnp.bfloat16)
    w2b = params["w2"].astype(jnp.bfloat16)
    w3b = params["w3"].astype(jnp.bfloat16)
    h1 = jnp.maximum(jnp.dot(x.astype(jnp.bfloat16), w1b,
                             preferred_element_type=jnp.float32) + params["b1"], 0.0)
    h2 = jnp.maximum(jnp.dot(h1.astype(jnp.bfloat16), w2b,
                             preferred_element_type=jnp.float32) + params["b2"], 0.0)
    ref_bf16 = jnp.dot(h2.astype(jnp.bfloat16), w3b,
                       preferred_element_type=jnp.float32) + params["b3"]

    # Reference 2: full f32 math (loose check on bf16 rounding).
    h1f = jnp.maximum(x @ params["w1"] + params["b1"], 0.0)
    h2f = jnp.maximum(h1f @ params["w2"] + params["b2"], 0.0)
    ref_f32 = h2f @ params["w3"] + params["b3"]

    assert out.shape == (batch, action_size)
    assert jnp.allclose(out, ref_bf16, atol=1e-4, rtol=1e-3)
    assert jnp.allclose(out, ref_f32, atol=5e-2, rtol=5e-2)

    print("KERNEL_OK")
</pallas_src>

<mosaic_0001>
module attributes {stable_mosaic.version = 11 : i64} {
  func.func @qnet_kernel(%arg0: i32, %arg1: memref<128x16xbf16, #tpu.memory_space<vmem>>, %arg2: memref<3x128x128xbf16, #tpu.memory_space<vmem>>, %arg3: memref<3x128xf32, #tpu.memory_space<vmem>>, %arg4: memref<128x4xf32, #tpu.memory_space<vmem>>) attributes {dimension_semantics = [#tpu.dimension_semantics<parallel>], iteration_bounds = array<i64: 2>, scalar_prefetch = 0 : i64, scratch_operands = 0 : i64, tpu.core_type = #tpu.core_type<tc>, window_params = [{transform_indices = @transform_0, window_bounds = array<i64: 128, 16>}, {pipeline_mode = #tpu.pipeline_mode<synchronous>, transform_indices = @transform_1, window_bounds = array<i64: 3, 128, 128>}, {pipeline_mode = #tpu.pipeline_mode<synchronous>, transform_indices = @transform_2, window_bounds = array<i64: 3, 128>}, {transform_indices = @transform_3, window_bounds = array<i64: 128, 4>}]} {
    %c0 = arith.constant 0 : index
    %c0_0 = arith.constant 0 : index
    %0 = vector.load %arg3[%c0, %c0_0] : memref<3x128xf32, #tpu.memory_space<vmem>>, vector<3x128xf32>
    %c0_1 = arith.constant 0 : index
    %c0_2 = arith.constant 0 : index
    %c0_3 = arith.constant 0 : index
    %1 = vector.load %arg2[%c0_1, %c0_2, %c0_3] : memref<3x128x128xbf16, #tpu.memory_space<vmem>>, vector<1x128x128xbf16>
    %2 = vector.shape_cast %1 : vector<1x128x128xbf16> to vector<128x128xbf16>
    %c0_4 = arith.constant 0 : index
    %c0_5 = arith.constant 0 : index
    %3 = vector.load %arg1[%c0_4, %c0_5] : memref<128x16xbf16, #tpu.memory_space<vmem>>, vector<128x16xbf16>
    %4 = vector.extract_strided_slice %2 {offsets = [0, 0], sizes = [16, 128], strides = [1, 1]} : vector<128x128xbf16> to vector<16x128xbf16>
    %cst = arith.constant dense<0.000000e+00> : vector<128x128xf32>
    %5 = tpu.matmul %3, %4, %cst {dimension_numbers = #tpu.dot_dimension_numbers<[1], [0], [0], [1], [0, 0, 1, 1], [], []>} : vector<128x16xbf16>, vector<16x128xbf16>, vector<128x128xf32> -> vector<128x128xf32>
    %6 = vector.extract_strided_slice %0 {offsets = [0, 0], sizes = [1, 128], strides = [1, 1]} : vector<3x128xf32> to vector<1x128xf32>
    %7 = vector.broadcast %6 : vector<1x128xf32> to vector<128x128xf32>
    %8 = arith.addf %5, %7 : vector<128x128xf32>
    %cst_6 = arith.constant 0.000000e+00 : f32
    %9 = vector.broadcast %cst_6 : f32 to vector<128x128xf32>
    %10 = arith.maximumf %8, %9 : vector<128x128xf32>
    %11 = arith.truncf %10 : vector<128x128xf32> to vector<128x128xbf16>
    %c1 = arith.constant 1 : index
    %c0_7 = arith.constant 0 : index
    %c0_8 = arith.constant 0 : index
    %12 = vector.load %arg2[%c1, %c0_7, %c0_8] : memref<3x128x128xbf16, #tpu.memory_space<vmem>>, vector<1x128x128xbf16>
    %13 = vector.shape_cast %12 : vector<1x128x128xbf16> to vector<128x128xbf16>
    %cst_9 = arith.constant dense<0.000000e+00> : vector<128x128xf32>
    %14 = tpu.matmul %11, %13, %cst_9 {dimension_numbers = #tpu.dot_dimension_numbers<[1], [0], [0], [1], [0, 0, 1, 1], [], []>} : vector<128x128xbf16>, vector<128x128xbf16>, vector<128x128xf32> -> vector<128x128xf32>
    %15 = vector.extract_strided_slice %0 {offsets = [1, 0], sizes = [1, 128], strides = [1, 1]} : vector<3x128xf32> to vector<1x128xf32>
    %16 = vector.broadcast %15 : vector<1x128xf32> to vector<128x128xf32>
    %17 = arith.addf %14, %16 : vector<128x128xf32>
    %cst_10 = arith.constant 0.000000e+00 : f32
    %18 = vector.broadcast %cst_10 : f32 to vector<128x128xf32>
    %19 = arith.maximumf %17, %18 : vector<128x128xf32>
    %20 = arith.truncf %19 : vector<128x128xf32> to vector<128x128xbf16>
    %c2 = arith.constant 2 : index
    %c0_11 = arith.constant 0 : index
    %c0_12 = arith.constant 0 : index
    %21 = vector.load %arg2[%c2, %c0_11, %c0_12] : memref<3x128x128xbf16, #tpu.memory_space<vmem>>, vector<1x128x128xbf16>
    %22 = vector.shape_cast %21 : vector<1x128x128xbf16> to vector<128x128xbf16>
    %cst_13 = arith.constant dense<0.000000e+00> : vector<128x128xf32>
    %23 = tpu.matmul %20, %22, %cst_13 {dimension_numbers = #tpu.dot_dimension_numbers<[1], [0], [0], [1], [0, 0, 1, 1], [], []>} : vector<128x128xbf16>, vector<128x128xbf16>, vector<128x128xf32> -> vector<128x128xf32>
    %24 = vector.extract_strided_slice %0 {offsets = [2, 0], sizes = [1, 128], strides = [1, 1]} : vector<3x128xf32> to vector<1x128xf32>
    %25 = vector.broadcast %24 : vector<1x128xf32> to vector<128x128xf32>
    %26 = arith.addf %23, %25 : vector<128x128xf32>
    %27 = vector.extract_strided_slice %26 {offsets = [0, 0], sizes = [128, 4], strides = [1, 1]} : vector<128x128xf32> to vector<128x4xf32>
    %c0_14 = arith.constant 0 : index
    %c0_15 = arith.constant 0 : index
    %28 = vector.load %arg4[%c0_14, %c0_15] : memref<128x4xf32, #tpu.memory_space<vmem>>, vector<128x4xf32>
    tpu.vector_store %arg4[%c0_14, %c0_15], %27 {strides = array<i32>} : memref<128x4xf32, #tpu.memory_space<vmem>>, vector<128x4xf32>,
    return
  }
  func.func @transform_0(%arg0: i32) -> (i32, i32) {
    %c0_i32 = arith.constant 0 : i32
    %c0_i32_0 = arith.constant 0 : i32
    return %arg0, %c0_i32 : i32, i32
  }
  func.func @transform_1(%arg0: i32) -> (i32, i32, i32) {
    %c0_i32 = arith.constant 0 : i32
    %c0_i32_0 = arith.constant 0 : i32
    %c0_i32_1 = arith.constant 0 : i32
    %c0_i32_2 = arith.constant 0 : i32
    return %c0_i32, %c0_i32_0, %c0_i32_1 : i32, i32, i32
  }
  func.func @transform_2(%arg0: i32) -> (i32, i32) {
    %c0_i32 = arith.constant 0 : i32
    %c0_i32_0 = arith.constant 0 : i32
    %c0_i32_1 = arith.constant 0 : i32
    return %c0_i32, %c0_i32_0 : i32, i32
  }
  func.func @transform_3(%arg0: i32) -> (i32, i32) {
    %c0_i32 = arith.constant 0 : i32
    %c0_i32_0 = arith.constant 0 : i32
    return %arg0, %c0_i32 : i32, i32
  }
}

</mosaic_0001>

<llo_original>
// kernel: qnetwork_forward.1
$region0: #{qnetwork_forward.1}
  #allocation0 [shape = 'u32[]', space=smem, size = 0x4, offset = 0x4, fixed_abs, tag = 'smem constant byte address 0x4 - core index']
  #allocation1 [shape = 'u32[144,128]{1,0:T(1,128)}', space=vmem, size = 0x12000, scoped, tag = 'internal scratch']
  %s0 = inlined_call_operand.vmem [shape: bf16[256,16], index: 0, kind: input, shape index: {}]
  %s1 = inlined_call_operand.vmem [shape: bf16[3,128,128], index: 1, kind: input, shape index: {}]
  %s2 = inlined_call_operand.vmem [shape: f32[3,128], index: 2, kind: input, shape index: {}]
  %s3 = inlined_call_operand.vmem [shape: f32[256,4], index: 3, kind: output, shape index: {}]
  %s4 = sld [smem:[#allocation0]]
  $region45: #{qnetwork_forward.1} parent=0
    _
  %s6 = ssub.s32 1, %s4
  %s7 = scalar_select 0, %s6, %s4
  loop: start=0, step=1, limit=4
  $region2: #{qnetwork_forward.1} parent=0 // loop_pre_header
    _
  $region3: #{qnetwork_forward.1} parent=0 // loop_header
    %s9 = sphi 0, %s13
    %p10 = scmp.ge.s32.totalorder %s9, 4
    %s19 = sphi 0, %s21
    %s22 = sphi 0, %s19
    %s23 = sphi 0, %s22
    %s39 = sphi 0, %s23
    %s43 = sphi 0, %s43
    %s45 = sphi 0, %s43
    %s46 = sphi 0, %s45
    %s60 = sphi 0, %s46
    %s64 = sphi 0, %s64
    %s66 = sphi 0, %s64
    %s67 = sphi 0, %s66
    %s81 = sphi 0, %s67
    %s87 = sphi 0, %s89
    %s90 = sphi 0, %s87
    %s91 = sphi 0, %s90
    %s107 = sphi 0, %s91
  $region4: #{qnetwork_forward.1} parent=0 // loop_header_branch
    %12 = sbr.rel (%p10) target = $region8
  $region5: #{qnetwork_forward.1} parent=0 // loop_body
    %s14 = ssub.s32 %s9, 1
    %s15 = ssub.s32 %s9, 2
    %s16 = sadd.s32 %s9, 1
    %s17 = ssub.s32 %s9, %s16
    %p18 = scmp.eq.s32.totalorder %s17, 0
    %s20 = sadd.s32 %s19, 1
    %s21 = scalar_select %p18, %s19, %s20
    %p24 = pneg %p18
    %p25 = scmp.eq.s32.totalorder %s9, 1
    %p26 = por %p24, %p25
    %p27 = scmp.ne.s32.totalorder %s19, %s22
    %p28 = scmp.eq.s32.totalorder %s9, 0
    %p29 = por %p27, %p28
    %p30 = scmp.ne.s32.totalorder %s19, %s22
    %p31 = scmp.eq.s32.totalorder %s14, 1
    %p32 = por %p30, %p31
    %p33 = scmp.ne.s32.totalorder %s22, %s23
    %p34 = scmp.eq.s32.totalorder %s14, 0
    %p35 = por %p33, %p34
    %p36 = scmp.ne.s32.totalorder %s22, %s23
    %p37 = scmp.eq.s32.totalorder %s15, 1
    %p38 = por %p36, %p37
    %p40 = scmp.ne.s32.totalorder %s23, %s39
    %p41 = scmp.eq.s32.totalorder %s15, 0
    %p42 = por %p40, %p41
    %s44 = sadd.s32 %s43, 1
    %p47 = scmp.eq.s32.totalorder %s9, 1
    %p48 = scmp.ne.s32.totalorder %s43, %s45
    %p49 = scmp.eq.s32.totalorder %s9, 0
    %p50 = por %p48, %p49
    %p51 = scmp.ne.s32.totalorder %s43, %s45
    %p52 = scmp.eq.s32.totalorder %s14, 1
    %p53 = por %p51, %p52
    %p54 = scmp.ne.s32.totalorder %s45, %s46
    %p55 = scmp.eq.s32.totalorder %s14, 0
    %p56 = por %p54, %p55
    %p57 = scmp.ne.s32.totalorder %s45, %s46
    %p58 = scmp.eq.s32.totalorder %s15, 1
    %p59 = por %p57, %p58
    %p61 = scmp.ne.s32.totalorder %s46, %s60
    %p62 = scmp.eq.s32.totalorder %s15, 0
    %p63 = por %p61, %p62
    %s65 = sadd.s32 %s64, 1
    %p68 = scmp.eq.s32.totalorder %s9, 1
    %p69 = scmp.ne.s32.totalorder %s64, %s66
    %p70 = scmp.eq.s32.totalorder %s9, 0
    %p71 = por %p69, %p70
    %p72 = scmp.ne.s32.totalorder %s64, %s66
    %p73 = scmp.eq.s32.totalorder %s14, 1
    %p74 = por %p72, %p73
    %p75 = scmp.ne.s32.totalorder %s66, %s67
    %p76 = scmp.eq.s32.totalorder %s14, 0
    %p77 = por %p75, %p76
    %p78 = scmp.ne.s32.totalorder %s66, %s67
    %p79 = scmp.eq.s32.totalorder %s15, 1
    %p80 = por %p78, %p79
    %p82 = scmp.ne.s32.totalorder %s67, %s81
    %p83 = scmp.eq.s32.totalorder %s15, 0
    %p84 = por %p82, %p83
    %s85 = ssub.s32 %s9, %s16
    %p86 = scmp.eq.s32.totalorder %s85, 0
    %s88 = sadd.s32 %s87, 1
    %s89 = scalar_select %p86, %s87, %s88
    %p92 = pneg %p86
    %p93 = scmp.eq.s32.totalorder %s9, 1
    %p94 = por %p92, %p93
    %p95 = scmp.ne.s32.totalorder %s87, %s90
    %p96 = scmp.eq.s32.totalorder %s9, 0
    %p97 = por %p95, %p96
    %p98 = scmp.ne.s32.totalorder %s87, %s90
    %p99 = scmp.eq.s32.totalorder %s14, 1
    %p100 = por %p98, %p99
    %p101 = scmp.ne.s32.totalorder %s90, %s91
    %p102 = scmp.eq.s32.totalorder %s14, 0
    %p103 = por %p101, %p102
    %p104 = scmp.ne.s32.totalorder %s90, %s91
    %p105 = scmp.eq.s32.totalorder %s15, 1
    %p106 = por %p104, %p105
    %p108 = scmp.ne.s32.totalorder %s91, %s107
    %p109 = scmp.eq.s32.totalorder %s15, 0
    %p110 = por %p108, %p109
    %p111 = scmp.le.s32.totalorder 1, %s9
    %p112 = scmp.lt.s32.totalorder %s9, 3
    %p113 = pnand %p111, %p112
    %p114 = pneg %p113
    // Predicated region
    $region9: #{qnetwork_forward.1} parent=5 // pred_check
      _
    $region10: #{qnetwork_forward.1} parent=5 // pred_check_branch
      %116 = sbr.rel (%p113) target = $region12
    $region11: #{qnetwork_forward.1} parent=5 // pred_region
      %s117 = ssub.s32 %s9, 1
      // Predicated region
      $region13: #{qnetwork_forward.1} parent=11 // pred_check
        %p118 = pneg %p56
      $region14: #{qnetwork_forward.1} parent=11 // pred_check_branch
        %120 = sbr.rel (%p118) target = $region16
      $region15: #{qnetwork_forward.1} parent=11 // pred_region
        _
      $region16: #{qnetwork_forward.1} parent=11 // pred_fallthru
        _
      // Predicated region
      $region17: #{qnetwork_forward.1} parent=11 // pred_check
        %p121 = pneg %p77
      $region18: #{qnetwork_forward.1} parent=11 // pred_check_branch
        %123 = sbr.rel (%p121) target = $region20
      $region19: #{qnetwork_forward.1} parent=11 // pred_region
        _
      $region20: #{qnetwork_forward.1} parent=11 // pred_fallthru
        _
    $region12: #{qnetwork_forward.1} parent=5 // pred_fallthru
      _
    %p124 = scmp.lt.s32.totalorder %s9, 2
    // Predicated region
    $region21: #{qnetwork_forward.1} parent=5 // pred_check
      %p125 = pneg %p124
    $region22: #{qnetwork_forward.1} parent=5 // pred_check_branch
      %127 = sbr.rel (%p125) target = $region24
    $region23: #{qnetwork_forward.1} parent=5 // pred_region
      // Predicated region
      $region25: #{qnetwork_forward.1} parent=23 // pred_check
        %p128 = pneg %p29
      $region26: #{qnetwork_forward.1} parent=23 // pred_check_branch
        %130 = sbr.rel (%p128) target = $region28
      $region27: #{qnetwork_forward.1} parent=23 // pred_region
        %s131 = smul.u32 16, %s9
        %p132 = scmp.lt.s32.totalorder %s131, 31
        %s133 = scalar_select %p132, %s131, 31
        %s134 = smul.addr %s133, 4
        %s135 = scalar_lea.vmem %s0, %s134
        %s136 = smul.u32 16, %s9
      $region28: #{qnetwork_forward.1} parent=23 // pred_fallthru
        _
    $region24: #{qnetwork_forward.1} parent=5 // pred_fallthru
      _
    %p137 = scmp.le.s32.totalorder 1, %s9
    %p138 = scmp.lt.s32.totalorder %s9, 3
    %p139 = pnand %p137, %p138
    %p140 = pneg %p139
    // Predicated region
    $region29: #{qnetwork_forward.1} parent=5 // pred_check
      _
    $region30: #{qnetwork_forward.1} parent=5 // pred_check_branch
      %142 = sbr.rel (%p139) target = $region32
    $region31: #{qnetwork_forward.1} parent=5 // pred_region
      %s143 = ssub.s32 %s9, 1
      %s144 = smul.u32 16, %s14
      %p145 = scmp.lt.s32.totalorder %s144, 31
      %s146 = scalar_select %p145, %s144, 31
      %s147 = smul.addr %s146, 4
      %s148 = scalar_lea.vmem %s0, %s147
      %p149 = pneg %p35
      %p150 = pneg %p32
      %p151 = pneg %p56
      %p152 = pneg %p53
      %p153 = pneg %p77
      %p154 = pneg %p74
      %p155 = pneg %p103
      %p156 = pneg %p100
      %s157 = smul.u32 16, %s14
      %p158 = scmp.lt.s32.totalorder %s157, 31
      %s159 = scalar_select %p158, %s157, 31
      %s160 = smul.addr %s159, 8
      %s161 = scalar_lea.vmem %s3, %s160
      %s162 = smul.u32 16, %s14
      %p163 = scmp.lt.s32.totalorder %s162, 31
      %s164 = scalar_select %p163, %s162, 31
      %s165 = smul.addr %s164, 4
      %s166 = scalar_lea.vmem %s0, %s165
      %s167 = smul.u32 16, %s14
      %s168 = smul.u32 16, %s14
      %p169 = scmp.lt.s32.totalorder %s168, 31
      %s170 = scalar_select %p169, %s168, 31
      %s171 = smul.addr %s170, 8
      %s172 = scalar_lea.vmem %s3, %s171
      %s173 = smul.u32 16, %s14
      %v175 = vld [vmem:[%s2] sm:$0x7]
      %v176 = vld [vmem:[%s1] sm:$0xf]
      %v177 = vld [vmem:[%s1 + $0x4] sm:$0xf]
      %v178 = vld [vmem:[%s166] sm:$0xf]
      %v179 = vld [vmem:[%s166 + $0x4] sm:$0xf]
      %v180 = vld [vmem:[%s166 + $0x8] sm:$0xf]
      %v181 = vld [vmem:[%s166 + $0xc] sm:$0xf]
      %v182 = vld [vmem:[%s166 + $0x10] sm:$0xf]
      %v183 = vld [vmem:[%s166 + $0x14] sm:$0xf]
      %v184 = vld [vmem:[%s166 + $0x18] sm:$0xf]
      %v185 = vld [vmem:[%s166 + $0x1c] sm:$0xf]
      %v186 = vld [vmem:[%s166 + $0x20] sm:$0xf]
      %v187 = vld [vmem:[%s166 + $0x24] sm:$0xf]
      %v188 = vld [vmem:[%s166 + $0x28] sm:$0xf]
      %v189 = vld [vmem:[%s166 + $0x2c] sm:$0xf]
      %v190 = vld [vmem:[%s166 + $0x30] sm:$0xf]
      %v191 = vld [vmem:[%s166 + $0x34] sm:$0xf]
      %v192 = vld [vmem:[%s166 + $0x38] sm:$0xf]
      %v193 = vld [vmem:[%s166 + $0x3c] sm:$0xf]
      %v194 = vlaneseq
      %v195 = vshrl.u32 %v194, 7
      %v196 = vsub.s32 0, %v195
      %v197 = vrot.slane %v175, %v196
      %v214 = vunpack.c.l.b16 %v178
      %v215 = vunpack.c.l.b16 %v179
      %v216 = vunpack.c.l.b16 %v180
      %v217 = vunpack.c.l.b16 %v181
      %v218 = vunpack.c.l.b16 %v182
      %v219 = vunpack.c.l.b16 %v183
      %v220 = vunpack.c.l.b16 %v184
      %v221 = vunpack.c.l.b16 %v185
      %v222 = vunpack.c.l.b16 %v186
      %v223 = vunpack.c.l.b16 %v187
      %v224 = vunpack.c.l.b16 %v188
      %v225 = vunpack.c.l.b16 %v189
      %v226 = vunpack.c.l.b16 %v190
      %v227 = vunpack.c.l.b16 %v191
      %v228 = vunpack.c.l.b16 %v192
      %v229 = vunpack.c.l.b16 %v193
      %v230 = vpack.c.b16 %v215, %v214
      %v231 = vpack.c.b16 %v217, %v216
      %v232 = vpack.c.b16 %v219, %v218
      %v233 = vpack.c.b16 %v221, %v220
      %v234 = vpack.c.b16 %v223, %v222
      %v235 = vpack.c.b16 %v225, %v224
      %v236 = vpack.c.b16 %v227, %v226
      %v237 = vpack.c.b16 %v229, %v228
      %v240 = vunpack.c.l.b16 %v176
      %v241 = vunpack.c.l.b16 %v177
      %v242 = vpack.c.b16 %v241, %v240
      %vm244 = vcmask 130048
      %v246 = vsel %vm244, %v230, 0
      %v249 = vsel %vm244, %v231, 0
      %v252 = vsel %vm244, %v232, 0
      %v255 = vsel %vm244, %v233, 0
      %v258 = vsel %vm244, %v234, 0
      %v261 = vsel %vm244, %v235, 0
      %v264 = vsel %vm244, %v236, 0
      %v267 = vsel %vm244, %v237, 0
      %269 = vmatprep.subr.bf16.mxu0 0
      %270 = vmatpush1.bf16.msra.mxu0 %v242
      %271 = vmatprep.subr.bf16.mxu0 0
      %272 = vmatpush1.bf16.msra.mxu0 0
      %273 = vmatprep.subr.bf16.mxu0 0
      %274 = vmatpush1.bf16.msra.mxu0 0
      %275 = vmatprep.subr.bf16.mxu0 0
      %276 = vmatpush1.bf16.msra.mxu0 0
      %277 = vmatprep.subr.bf16.mxu0 0
      %278 = vmatpush1.bf16.msra.mxu0 0
      %279 = vmatprep.subr.bf16.mxu0 0
      %280 = vmatpush1.bf16.msra.mxu0 0
      %281 = vmatprep.subr.bf16.mxu0 0
      %282 = vmatpush1.bf16.msra.mxu0 0
      %283 = vmatprep.subr.bf16.mxu0 0
      %284 = vmatpush1.bf16.msra.mxu0 0
      %285 = vmatprep.subr.bf16.mxu0 0
      %286 = vmatpush1.bf16.msra.mxu0 0
      %287 = vmatprep.subr.bf16.mxu0 0
      %288 = vmatpush1.bf16.msra.mxu0 0
      %289 = vmatprep.subr.bf16.mxu0 0
      %290 = vmatpush1.bf16.msra.mxu0 0
      %291 = vmatprep.subr.bf16.mxu0 0
      %292 = vmatpush1.bf16.msra.mxu0 0
      %293 = vmatprep.subr.bf16.mxu0 0
      %294 = vmatpush1.bf16.msra.mxu0 0
      %295 = vmatprep.subr.bf16.mxu0 0
      %296 = vmatpush1.bf16.msra.mxu0 0
      %297 = vmatprep.subr.bf16.mxu0 0
      %298 = vmatpush1.bf16.msra.mxu0 0
      %299 = vmatprep.subr.bf16.mxu0 0
      %300 = vmatpush1.bf16.msra.mxu0 0
      %301 = vmatprep.mubr.bf16.mxu0 0
      %302 = vmatmul.mubr.bf16.gmra.mrb[0].mxu0 %v246
      %v303 = vpop.f32.mrb[0].mxu0
      %v304 = vadd.f32 %v197, %v303
      %v305 = vpop.f32.mrb[0].mxu0
      %v306 = vpop.f32.mrb[0].mxu0
      %v307 = vadd.f32 %v197, %v306
      %v308 = vpop.f32.mrb[0].mxu0
      %309 = vmatprep.mubr.bf16.mxu0 0
      %310 = vmatmul.mubr.bf16.gmra.mrb[0].mxu0 %v249
      %v311 = vpop.f32.mrb[0].mxu0
      %v312 = vadd.f32 %v197, %v311
      %v313 = vpop.f32.mrb[0].mxu0
      %v314 = vpop.f32.mrb[0].mxu0
      %v315 = vadd.f32 %v197, %v314
      %v316 = vpop.f32.mrb[0].mxu0
      %317 = vmatprep.mubr.bf16.mxu0 0
      %318 = vmatmul.mubr.bf16.gmra.mrb[0].mxu0 %v252
      %v319 = vpop.f32.mrb[0].mxu0
      %v320 = vadd.f32 %v197, %v319
      %v321 = vpop.f32.mrb[0].mxu0
      %v322 = vpop.f32.mrb[0].mxu0
      %v323 = vadd.f32 %v197, %v322
      %v324 = vpop.f32.mrb[0].mxu0
      %325 = vmatprep.mubr.bf16.mxu0 0
      %326 = vmatmul.mubr.bf16.gmra.mrb[0].mxu0 %v255
      %v327 = vpop.f32.mrb[0].mxu0
      %v328 = vadd.f32 %v197, %v327
      %v329 = vpop.f32.mrb[0].mxu0
      %v330 = vpop.f32.mrb[0].mxu0
      %v331 = vadd.f32 %v197, %v330
      %v332 = vpop.f32.mrb[0].mxu0
      %333 = vmatprep.mubr.bf16.mxu0 0
      %334 = vmatmul.mubr.bf16.gmra.mrb[0].mxu0 %v258
      %v335 = vpop.f32.mrb[0].mxu0
      %v336 = vadd.f32 %v197, %v335
      %v337 = vpop.f32.mrb[0].mxu0
      %v338 = vpop.f32.mrb[0].mxu0
      %v339 = vadd.f32 %v197, %v338
      %v340 = vpop.f32.mrb[0].mxu0
      %341 = vmatprep.mubr.bf16.mxu0 0
      %342 = vmatmul.mubr.bf16.gmra.mrb[0].mxu0 %v261
      %v343 = vpop.f32.mrb[0].mxu0
      %v344 = vadd.f32 %v197, %v343
      %v345 = vpop.f32.mrb[0].mxu0
      %v346 = vpop.f32.mrb[0].mxu0
      %v347 = vadd.f32 %v197, %v346
      %v348 = vpop.f32.mrb[0].mxu0
      %349 = vmatprep.mubr.bf16.mxu0 0
      %350 = vmatmul.mubr.bf16.gmra.mrb[0].mxu0 %v264
      %v351 = vpop.f32.mrb[0].mxu0
      %v352 = vadd.f32 %v197, %v351
      %v353 = vpop.f32.mrb[0].mxu0
      %v354 = vpop.f32.mrb[0].mxu0
      %v355 = vadd.f32 %v197, %v354
      %v356 = vpop.f32.mrb[0].mxu0
      %357 = vmatprep.mubr.bf16.mxu0 0
      %358 = vmatmul.mubr.bf16.gmra.mrb[0].mxu0 %v267
      %v359 = vpop.f32.mrb[0].mxu0
      %v360 = vadd.f32 %v197, %v359
      %v361 = vpop.f32.mrb[0].mxu0
      %v362 = vpop.f32.mrb[0].mxu0
      %v363 = vadd.f32 %v197, %v362
      %v364 = vpop.f32.mrb[0].mxu0
      %365 = vdwg.mxu0
      %v366 = vmax.f32 %v304, 0.0
      %v367 = vmax.f32 %v307, 0.0
      %v368 = vmax.f32 %v312, 0.0
      %v369 = vmax.f32 %v315, 0.0
      %v370 = vmax.f32 %v320, 0.0
      %v371 = vmax.f32 %v323, 0.0
      %v372 = vmax.f32 %v328, 0.0
      %v373 = vmax.f32 %v331, 0.0
      %v374 = vmax.f32 %v336, 0.0
      %v375 = vmax.f32 %v339, 0.0
      %v376 = vmax.f32 %v344, 0.0
      %v377 = vmax.f32 %v347, 0.0
      %v378 = vmax.f32 %v352, 0.0
      %v379 = vmax.f32 %v355, 0.0
      %v380 = vmax.f32 %v360, 0.0
      %v381 = vmax.f32 %v363, 0.0
      %v382 = vpack.c.bf16 %v367, %v366
      %v383 = vpack.c.bf16 %v369, %v368
      %v384 = vpack.c.bf16 %v371, %v370
      %v385 = vpack.c.bf16 %v373, %v372
      %v386 = vpack.c.bf16 %v375, %v374
      %v387 = vpack.c.bf16 %v377, %v376
      %v388 = vpack.c.bf16 %v379, %v378
      %v389 = vpack.c.bf16 %v381, %v380
      %s390 = scalar_lea.vmem %s1, 64
      %v391 = vld [vmem:[%s390] sm:$0xf]
      %v392 = vld [vmem:[%s390 + $0x4] sm:$0xf]
      %v393 = vld [vmem:[%s390 + $0x8] sm:$0xf]
      %v394 = vld [vmem:[%s390 + $0xc] sm:$0xf]
      %v395 = vld [vmem:[%s390 + $0x10] sm:$0xf]
      %v396 = vld [vmem:[%s390 + $0x14] sm:$0xf]
      %v397 = vld [vmem:[%s390 + $0x18] sm:$0xf]
      %v398 = vld [vmem:[%s390 + $0x1c] sm:$0xf]
      %v399 = vld [vmem:[%s390 + $0x20] sm:$0xf]
      %v400 = vld [vmem:[%s390 + $0x24] sm:$0xf]
      %v401 = vld [vmem:[%s390 + $0x28] sm:$0xf]
      %v402 = vld [vmem:[%s390 + $0x2c] sm:$0xf]
      %v403 = vld [vmem:[%s390 + $0x30] sm:$0xf]
      %v404 = vld [vmem:[%s390 + $0x34] sm:$0xf]
      %v405 = vld [vmem:[%s390 + $0x38] sm:$0xf]
      %v406 = vld [vmem:[%s390 + $0x3c] sm:$0xf]
      %v407 = vlaneseq
      %v408 = vshrl.u32 %v407, 7
      %v409 = vsub.s32 1, %v408
      %v410 = vrot.slane %v175, %v409
      %v427 = vunpack.c.l.b16 %v391
      %v428 = vunpack.c.l.b16 %v392
      %v429 = vunpack.c.l.b16 %v393
      %v430 = vunpack.c.l.b16 %v394
      %v431 = vunpack.c.l.b16 %v395
      %v432 = vunpack.c.l.b16 %v396
      %v433 = vunpack.c.l.b16 %v397
      %v434 = vunpack.c.l.b16 %v398
      %v435 = vunpack.c.l.b16 %v399
      %v436 = vunpack.c.l.b16 %v400
      %v437 = vunpack.c.l.b16 %v401
      %v438 = vunpack.c.l.b16 %v402
      %v439 = vunpack.c.l.b16 %v403
      %v440 = vunpack.c.l.b16 %v404
      %v441 = vunpack.c.l.b16 %v405
      %v442 = vunpack.c.l.b16 %v406
      %v443 = vpack.c.b16 %v428, %v427
      %v444 = vpack.c.b16 %v430, %v429
      %v445 = vpack.c.b16 %v432, %v431
      %v446 = vpack.c.b16 %v434, %v433
      %v447 = vpack.c.b16 %v436, %v435
      %v448 = vpack.c.b16 %v438, %v437
      %v449 = vpack.c.b16 %v440, %v439
      %v450 = vpack.c.b16 %v442, %v441
      %459 = vmatprep.subr.bf16.mxu0 0
      %460 = vmatpush1.bf16.msra.mxu0 %v443
      %461 = vmatprep.subr.bf16.mxu0 0
      %462 = vmatpush1.bf16.msra.mxu0 %v444
      %463 = vmatprep.subr.bf16.mxu0 0
      %464 = vmatpush1.bf16.msra.mxu0 %v445
      %465 = vmatprep.subr.bf16.mxu0 0
      %466 = vmatpush1.bf16.msra.mxu0 %v446
      %467 = vmatprep.subr.bf16.mxu0 0
      %468 = vmatpush1.bf16.msra.mxu0 %v447
      %469 = vmatprep.subr.bf16.mxu0 0
      %470 = vmatpush1.bf16.msra.mxu0 %v448
      %471 = vmatprep.subr.bf16.mxu0 0
      %472 = vmatpush1.bf16.msra.mxu0 %v449
      %473 = vmatprep.subr.bf16.mxu0 0
      %474 = vmatpush1.bf16.msra.mxu0 %v450
      %475 = vmatprep.subr.bf16.mxu0 0
      %476 = vmatpush1.bf16.msra.mxu0 0
      %477 = vmatprep.subr.bf16.mxu0 0
      %478 = vmatpush1.bf16.msra.mxu0 0
      %479 = vmatprep.subr.bf16.mxu0 0
      %480 = vmatpush1.bf16.msra.mxu0 0
      %481 = vmatprep.subr.bf16.mxu0 0
      %482 = vmatpush1.bf16.msra.mxu0 0
      %483 = vmatprep.subr.bf16.mxu0 0
      %484 = vmatpush1.bf16.msra.mxu0 0
      %485 = vmatprep.subr.bf16.mxu0 0
      %486 = vmatpush1.bf16.msra.mxu0 0
      %487 = vmatprep.subr.bf16.mxu0 0
      %488 = vmatpush1.bf16.msra.mxu0 0
      %489 = vmatprep.subr.bf16.mxu0 0
      %490 = vmatpush1.bf16.msra.mxu0 0
      %491 = vmatprep.mubr.bf16.mxu0 0
      %492 = vmatmul.mubr.bf16.gmra.mrb[0].mxu0 %v382
      %v493 = vpop.f32.mrb[0].mxu0
      %v494 = vadd.f32 %v410, %v493
      %v495 = vpop.f32.mrb[0].mxu0
      %v496 = vpop.f32.mrb[0].mxu0
      %v497 = vadd.f32 %v410, %v496
      %v498 = vpop.f32.mrb[0].mxu0
      %499 = vmatprep.mubr.bf16.mxu0 0
      %500 = vmatmul.mubr.bf16.gmra.mrb[0].mxu0 %v383
      %v501 = vpop.f32.mrb[0].mxu0
      %v502 = vadd.f32 %v410, %v501
      %v503 = vpop.f32.mrb[0].mxu0
      %v504 = vpop.f32.mrb[0].mxu0
      %v505 = vadd.f32 %v410, %v504
      %v506 = vpop.f32.mrb[0].mxu0
      %507 = vmatprep.mubr.bf16.mxu0 0
      %508 = vmatmul.mubr.bf16.gmra.mrb[0].mxu0 %v384
      %v509 = vpop.f32.mrb[0].mxu0
      %v510 = vadd.f32 %v410, %v509
      %v511 = vpop.f32.mrb[0].mxu0
      %v512 = vpop.f32.mrb[0].mxu0
      %v513 = vadd.f32 %v410, %v512
      %v514 = vpop.f32.mrb[0].mxu0
      %515 = vmatprep.mubr.bf16.mxu0 0
      %516 = vmatmul.mubr.bf16.gmra.mrb[0].mxu0 %v385
      %v517 = vpop.f32.mrb[0].mxu0
      %v518 = vadd.f32 %v410, %v517
      %v519 = vpop.f32.mrb[0].mxu0
      %v520 = vpop.f32.mrb[0].mxu0
      %v521 = vadd.f32 %v410, %v520
      %v522 = vpop.f32.mrb[0].mxu0
      %523 = vmatprep.mubr.bf16.mxu0 0
      %524 = vmatmul.mubr.bf16.gmra.mrb[0].mxu0 %v386
      %v525 = vpop.f32.mrb[0].mxu0
      %v526 = vadd.f32 %v410, %v525
      %v527 = vpop.f32.mrb[0].mxu0
      %v528 = vpop.f32.mrb[0].mxu0
      %v529 = vadd.f32 %v410, %v528
      %v530 = vpop.f32.mrb[0].mxu0
      %531 = vmatprep.mubr.bf16.mxu0 0
      %532 = vmatmul.mubr.bf16.gmra.mrb[0].mxu0 %v387
      %v533 = vpop.f32.mrb[0].mxu0
      %v534 = vadd.f32 %v410, %v533
      %v535 = vpop.f32.mrb[0].mxu0
      %v536 = vpop.f32.mrb[0].mxu0
      %v537 = vadd.f32 %v410, %v536
      %v538 = vpop.f32.mrb[0].mxu0
      %539 = vmatprep.mubr.bf16.mxu0 0
      %540 = vmatmul.mubr.bf16.gmra.mrb[0].mxu0 %v388
      %v541 = vpop.f32.mrb[0].mxu0
      %v542 = vadd.f32 %v410, %v541
      %v543 = vpop.f32.mrb[0].mxu0
      %v544 = vpop.f32.mrb[0].mxu0
      %v545 = vadd.f32 %v410, %v544
      %v546 = vpop.f32.mrb[0].mxu0
      %547 = vmatprep.mubr.bf16.mxu0 0
      %548 = vmatmul.mubr.bf16.gmra.mrb[0].mxu0 %v389
      %v549 = vpop.f32.mrb[0].mxu0
      %v550 = vadd.f32 %v410, %v549
      %v551 = vpop.f32.mrb[0].mxu0
      %v552 = vpop.f32.mrb[0].mxu0
      %v553 = vadd.f32 %v410, %v552
      %v554 = vpop.f32.mrb[0].mxu0
      %555 = vdwg.mxu0
      %v556 = vmax.f32 %v494, 0.0
      %v557 = vmax.f32 %v497, 0.0
      %v558 = vmax.f32 %v502, 0.0
      %v559 = vmax.f32 %v505, 0.0
      %v560 = vmax.f32 %v510, 0.0
      %v561 = vmax.f32 %v513, 0.0
      %v562 = vmax.f32 %v518, 0.0
      %v563 = vmax.f32 %v521, 0.0
      %v564 = vmax.f32 %v526, 0.0
      %v565 = vmax.f32 %v529, 0.0
      %v566 = vmax.f32 %v534, 0.0
      %v567 = vmax.f32 %v537, 0.0
      %v568 = vmax.f32 %v542, 0.0
      %v569 = vmax.f32 %v545, 0.0
      %v570 = vmax.f32 %v550, 0.0
      %v571 = vmax.f32 %v553, 0.0
      %v572 = vpack.c.bf16 %v557, %v556
      %v573 = vpack.c.bf16 %v559, %v558
      %v574 = vpack.c.bf16 %v561, %v560
      %v575 = vpack.c.bf16 %v563, %v562
      %v576 = vpack.c.bf16 %v565, %v564
      %v577 = vpack.c.bf16 %v567, %v566
      %v578 = vpack.c.bf16 %v569, %v568
      %v579 = vpack.c.bf16 %v571, %v570
      %s580 = scalar_lea.vmem %s1, 128
      %v581 = vld [vmem:[%s580] sm:$0xf]
      %v582 = vld [vmem:[%s580 + $0x4] sm:$0xf]
      %v583 = vld [vmem:[%s580 + $0x8] sm:$0xf]
      %v584 = vld [vmem:[%s580 + $0xc] sm:$0xf]
      %v585 = vld [vmem:[%s580 + $0x10] sm:$0xf]
      %v586 = vld [vmem:[%s580 + $0x14] sm:$0xf]
      %v587 = vld [vmem:[%s580 + $0x18] sm:$0xf]
      %v588 = vld [vmem:[%s580 + $0x1c] sm:$0xf]
      %v589 = vld [vmem:[%s580 + $0x20] sm:$0xf]
      %v590 = vld [vmem:[%s580 + $0x24] sm:$0xf]
      %v591 = vld [vmem:[%s580 + $0x28] sm:$0xf]
      %v592 = vld [vmem:[%s580 + $0x2c] sm:$0xf]
      %v593 = vld [vmem:[%s580 + $0x30] sm:$0xf]
      %v594 = vld [vmem:[%s580 + $0x34] sm:$0xf]
      %v595 = vld [vmem:[%s580 + $0x38] sm:$0xf]
      %v596 = vld [vmem:[%s580 + $0x3c] sm:$0xf]
      %v597 = vlaneseq
      %v598 = vshrl.u32 %v597, 7
      %v599 = vsub.s32 2, %v598
      %v600 = vrot.slane %v175, %v599
      %v617 = vunpack.c.l.b16 %v581
      %v618 = vunpack.c.l.b16 %v582
      %v619 = vunpack.c.l.b16 %v583
      %v620 = vunpack.c.l.b16 %v584
      %v621 = vunpack.c.l.b16 %v585
      %v622 = vunpack.c.l.b16 %v586
      %v623 = vunpack.c.l.b16 %v587
      %v624 = vunpack.c.l.b16 %v588
      %v625 = vunpack.c.l.b16 %v589
      %v626 = vunpack.c.l.b16 %v590
      %v627 = vunpack.c.l.b16 %v591
      %v628 = vunpack.c.l.b16 %v592
      %v629 = vunpack.c.l.b16 %v593
      %v630 = vunpack.c.l.b16 %v594
      %v631 = vunpack.c.l.b16 %v595
      %v632 = vunpack.c.l.b16 %v596
      %v633 = vpack.c.b16 %v618, %v617
      %v634 = vpack.c.b16 %v620, %v619
      %v635 = vpack.c.b16 %v622, %v621
      %v636 = vpack.c.b16 %v624, %v623
      %v637 = vpack.c.b16 %v626, %v625
      %v638 = vpack.c.b16 %v628, %v627
      %v639 = vpack.c.b16 %v630, %v629
      %v640 = vpack.c.b16 %v632, %v631
      %649 = vmatprep.subr.bf16.mxu0 0
      %650 = vmatpush1.bf16.msra.mxu0 %v633
      %651 = vmatprep.subr.bf16.mxu0 0
      %652 = vmatpush1.bf16.msra.mxu0 %v634
      %653 = vmatprep.subr.bf16.mxu0 0
      %654 = vmatpush1.bf16.msra.mxu0 %v635
      %655 = vmatprep.subr.bf16.mxu0 0
      %656 = vmatpush1.bf16.msra.mxu0 %v636
      %657 = vmatprep.subr.bf16.mxu0 0
      %658 = vmatpush1.bf16.msra.mxu0 %v637
      %659 = vmatprep.subr.bf16.mxu0 0
      %660 = vmatpush1.bf16.msra.mxu0 %v638
      %661 = vmatprep.subr.bf16.mxu0 0
      %662 = vmatpush1.bf16.msra.mxu0 %v639
      %663 = vmatprep.subr.bf16.mxu0 0
      %664 = vmatpush1.bf16.msra.mxu0 %v640
      %665 = vmatprep.subr.bf16.mxu0 0
      %666 = vmatpush1.bf16.msra.mxu0 0
      %667 = vmatprep.subr.bf16.mxu0 0
      %668 = vmatpush1.bf16.msra.mxu0 0
      %669 = vmatprep.subr.bf16.mxu0 0
      %670 = vmatpush1.bf16.msra.mxu0 0
      %671 = vmatprep.subr.bf16.mxu0 0
      %672 = vmatpush1.bf16.msra.mxu0 0
      %673 = vmatprep.subr.bf16.mxu0 0
      %674 = vmatpush1.bf16.msra.mxu0 0
      %675 = vmatprep.subr.bf16.mxu0 0
      %676 = vmatpush1.bf16.msra.mxu0 0
      %677 = vmatprep.subr.bf16.mxu0 0
      %678 = vmatpush1.bf16.msra.mxu0 0
      %679 = vmatprep.subr.bf16.mxu0 0
      %680 = vmatpush1.bf16.msra.mxu0 0
      %681 = vmatprep.mubr.bf16.mxu0 0
      %682 = vmatmul.mubr.bf16.gmra.mrb[0].mxu0 %v572
      %v683 = vpop.f32.mrb[0].mxu0
      %v684 = vadd.f32 %v600, %v683
      %v685 = vpop.f32.mrb[0].mxu0
      %v686 = vpop.f32.mrb[0].mxu0
      %v687 = vadd.f32 %v600, %v686
      %v688 = vpop.f32.mrb[0].mxu0
      %689 = vmatprep.mubr.bf16.mxu0 0
      %690 = vmatmul.mubr.bf16.gmra.mrb[0].mxu0 %v573
      %v691 = vpop.f32.mrb[0].mxu0
      %v692 = vadd.f32 %v600, %v691
      %v693 = vpop.f32.mrb[0].mxu0
      %v694 = vpop.f32.mrb[0].mxu0
      %v695 = vadd.f32 %v600, %v694
      %v696 = vpop.f32.mrb[0].mxu0
      %697 = vmatprep.mubr.bf16.mxu0 0
      %698 = vmatmul.mubr.bf16.gmra.mrb[0].mxu0 %v574
      %v699 = vpop.f32.mrb[0].mxu0
      %v700 = vadd.f32 %v600, %v699
      %v701 = vpop.f32.mrb[0].mxu0
      %v702 = vpop.f32.mrb[0].mxu0
      %v703 = vadd.f32 %v600, %v702
      %v704 = vpop.f32.mrb[0].mxu0
      %705 = vmatprep.mubr.bf16.mxu0 0
      %706 = vmatmul.mubr.bf16.gmra.mrb[0].mxu0 %v575
      %v707 = vpop.f32.mrb[0].mxu0
      %v708 = vadd.f32 %v600, %v707
      %v709 = vpop.f32.mrb[0].mxu0
      %v710 = vpop.f32.mrb[0].mxu0
      %v711 = vadd.f32 %v600, %v710
      %v712 = vpop.f32.mrb[0].mxu0
      %713 = vmatprep.mubr.bf16.mxu0 0
      %714 = vmatmul.mubr.bf16.gmra.mrb[0].mxu0 %v576
      %v715 = vpop.f32.mrb[0].mxu0
      %v716 = vadd.f32 %v600, %v715
      %v717 = vpop.f32.mrb[0].mxu0
      %v718 = vpop.f32.mrb[0].mxu0
      %v719 = vadd.f32 %v600, %v718
      %v720 = vpop.f32.mrb[0].mxu0
      %721 = vmatprep.mubr.bf16.mxu0 0
      %722 = vmatmul.mubr.bf16.gmra.mrb[0].mxu0 %v577
      %v723 = vpop.f32.mrb[0].mxu0
      %v724 = vadd.f32 %v600, %v723
      %v725 = vpop.f32.mrb[0].mxu0
      %v726 = vpop.f32.mrb[0].mxu0
      %v727 = vadd.f32 %v600, %v726
      %v728 = vpop.f32.mrb[0].mxu0
      %729 = vmatprep.mubr.bf16.mxu0 0
      %730 = vmatmul.mubr.bf16.gmra.mrb[0].mxu0 %v578
      %v731 = vpop.f32.mrb[0].mxu0
      %v732 = vadd.f32 %v600, %v731
      %v733 = vpop.f32.mrb[0].mxu0
      %v734 = vpop.f32.mrb[0].mxu0
      %v735 = vadd.f32 %v600, %v734
      %v736 = vpop.f32.mrb[0].mxu0
      %737 = vmatprep.mubr.bf16.mxu0 0
      %738 = vmatmul.mubr.bf16.gmra.mrb[0].mxu0 %v579
      %v739 = vpop.f32.mrb[0].mxu0
      %v740 = vadd.f32 %v600, %v739
      %v741 = vpop.f32.mrb[0].mxu0
      %v742 = vpop.f32.mrb[0].mxu0
      %v743 = vadd.f32 %v600, %v742
      %v744 = vpop.f32.mrb[0].mxu0
      %745 = vdwg.mxu0
      %vm746 = vcmask 31744
      %747 = vst.msk [vmem:[%s172] sm:$0xff] %vm746, %v684
      %748 = vst.msk [vmem:[%s172 + $0x8] sm:$0xff] %vm746, %v687
      %749 = vst.msk [vmem:[%s172 + $0x10] sm:$0xff] %vm746, %v692
      %750 = vst.msk [vmem:[%s172 + $0x18] sm:$0xff] %vm746, %v695
      %751 = vst.msk [vmem:[%s172 + $0x20] sm:$0xff] %vm746, %v700
      %752 = vst.msk [vmem:[%s172 + $0x28] sm:$0xff] %vm746, %v703
      %753 = vst.msk [vmem:[%s172 + $0x30] sm:$0xff] %vm746, %v708
      %754 = vst.msk [vmem:[%s172 + $0x38] sm:$0xff] %vm746, %v711
      %755 = vst.msk [vmem:[%s172 + $0x40] sm:$0xff] %vm746, %v716
      %756 = vst.msk [vmem:[%s172 + $0x48] sm:$0xff] %vm746, %v719
      %757 = vst.msk [vmem:[%s172 + $0x50] sm:$0xff] %vm746, %v724
      %758 = vst.msk [vmem:[%s172 + $0x58] sm:$0xff] %vm746, %v727
      %759 = vst.msk [vmem:[%s172 + $0x60] sm:$0xff] %vm746, %v732
      %760 = vst.msk [vmem:[%s172 + $0x68] sm:$0xff] %vm746, %v735
      %761 = vst.msk [vmem:[%s172 + $0x70] sm:$0xff] %vm746, %v740
      %762 = vst.msk [vmem:[%s172 + $0x78] sm:$0xff] %vm746, %v743
      %s763 = smul.u32 16, %s14
      %p764 = scmp.lt.s32.totalorder %s763, 31
      %s765 = scalar_select %p764, %s763, 31
      %s766 = smul.addr %s765, 8
      %s767 = scalar_lea.vmem %s3, %s766
      // Predicated region
      $region33: #{qnetwork_forward.1} parent=31 // pred_check
        %p768 = pneg %p100
      $region34: #{qnetwork_forward.1} parent=31 // pred_check_branch
        %770 = sbr.rel (%p768) target = $region36
      $region35: #{qnetwork_forward.1} parent=31 // pred_region
        %s771 = smul.u32 16, %s14
      $region36: #{qnetwork_forward.1} parent=31 // pred_fallthru
        _
    $region32: #{qnetwork_forward.1} parent=5 // pred_fallthru
      _
    %p772 = scmp.le.s32.totalorder 2, %s9
    // Predicated region
    $region37: #{qnetwork_forward.1} parent=5 // pred_check
      %p773 = pneg %p772
    $region38: #{qnetwork_forward.1} parent=5 // pred_check_branch
      %775 = sbr.rel (%p773) target = $region40
    $region39: #{qnetwork_forward.1} parent=5 // pred_region
      %s776 = ssub.s32 %s9, 2
      // Predicated region
      $region41: #{qnetwork_forward.1} parent=39 // pred_check
        %p777 = pneg %p106
      $region42: #{qnetwork_forward.1} parent=39 // pred_check_branch
        %779 = sbr.rel (%p777) target = $region44
      $region43: #{qnetwork_forward.1} parent=39 // pred_region
        %s780 = smul.u32 16, %s15
        %p781 = scmp.lt.s32.totalorder %s780, 31
        %s782 = scalar_select %p781, %s780, 31
        %s783 = smul.addr %s782, 8
        %s784 = scalar_lea.vmem %s3, %s783
      $region44: #{qnetwork_forward.1} parent=39 // pred_fallthru
        _
    $region40: #{qnetwork_forward.1} parent=5 // pred_fallthru
      _
  $region6: #{qnetwork_forward.1} parent=0 // loop_footer
    %s13 = sadd.s32 1, %s9
  $region7: #{qnetwork_forward.1} parent=0 // loop_footer_branch
    %8 = sbr.rel target = $region3
  $region8: #{qnetwork_forward.1} parent=0 // loop_exit
    _

</llo_original>
